<compile_context>
chip_gen: v5e
topology: v5e:2x2
jax: 0.10.0
libtpu: 0.0.40
codegen_flags: <defaults>
</compile_context>

<pallas_src>
import functools

import jax
import jax.numpy as jnp
from jax.experimental import pallas as pl
from jax.experimental.pallas import tpu as pltpu

LN_EPS = 1e-5            # PyTorch nn.LayerNorm default eps
LANE = 128               # TPU vreg lane width
SUBLANE = 8              # TPU vreg sublane count (f32)
MAX_BLOCK_B = 8192       # hard cap on rows per grid step
MIN_STEP_BYTES = 512 * 1024      # target >= ~0.5 MiB of activation HBM traffic/step
SINGLE_BUFFER_BYTES = 2 << 20    # single-buffer replicated weights above this size


def _round_up(n, m):
    return (n + m - 1) // m * m


def _cdiv(a, b):
    return (a + b - 1) // b


@functools.lru_cache(maxsize=1)
def _vmem_budget_bytes():
    """Generation-aware VMEM budget: ~3/4 of physical VMEM.

    ~96 MiB on v5e/v6e (128 MiB physical), ~48 MiB on v7x (64 MiB physical).
    Falls back to a value that is safe on every generation.
    """
    try:
        cap = int(pltpu.get_tpu_info().vmem_capacity_bytes)
    except Exception:
        cap = 64 << 20
    return (cap * 3) // 4


# ---------------------------------------------------------------------------
# Kernel
# ---------------------------------------------------------------------------

def _hidden_layernorm(h, gamma, beta, real_dim):
    """LayerNorm over the last axis for post-matmul activations.

    Any padded feature lanes of `h` are exactly zero (zero-padded weight/bias
    columns, tanh(0)=0), so sums over the padded width equal sums over the
    real width and no jnp.where masks are needed.  Variance uses the
    E[h^2] - mu^2 form (safe: |h| <= 1 after tanh).  Padded output lanes end
    up as beta (= 0 there), so they stay zero going into the next matmul.
    """
    inv_n = 1.0 / real_dim
    mu = jnp.sum(h, axis=-1, keepdims=True) * inv_n
    ms = jnp.sum(h * h, axis=-1, keepdims=True) * inv_n
    var = jnp.maximum(ms - mu * mu, 0.0)
    return (h - mu) * jax.lax.rsqrt(var + LN_EPS) * gamma + beta


def mlp_base_kernel(
    x_ref,
    ln0_w_ref, ln0_b_ref,
    w1_ref, b1_ref, ln1_w_ref, ln1_b_ref,
    w2_ref, b2_ref, ln2_w_ref, ln2_b_ref,
    o_ref,
    *, hidden_dim,
):
    f32 = jnp.float32
    x = x_ref[...].astype(f32)

    # feature_norm: LayerNorm over the (unpadded) input features.  The x block
    # keeps its logical width, so plain mean/variance are already correct.
    mu = jnp.mean(x, axis=-1, keepdims=True)
    d = x - mu
    var = jnp.mean(d * d, axis=-1, keepdims=True)
    h = (d * jax.lax.rsqrt(var + LN_EPS) * ln0_w_ref[...].astype(f32)
         + ln0_b_ref[...].astype(f32))

    # fc1: Linear -> Tanh -> LayerNorm (matmul at weight dtype, f32 accumulate)
    h = jnp.dot(h.astype(w1_ref.dtype), w1_ref[...], preferred_element_type=f32)
    h = jnp.tanh(h + b1_ref[...].astype(f32))
    h = _hidden_layernorm(h, ln1_w_ref[...].astype(f32),
                          ln1_b_ref[...].astype(f32), hidden_dim)

    # fc2: Linear -> Tanh -> LayerNorm
    h = jnp.dot(h.astype(w2_ref.dtype), w2_ref[...], preferred_element_type=f32)
    h = jnp.tanh(h + b2_ref[...].astype(f32))
    h = _hidden_layernorm(h, ln2_w_ref[...].astype(f32),
                          ln2_b_ref[...].astype(f32), hidden_dim)

    o_ref[...] = h.astype(o_ref.dtype)


# ---------------------------------------------------------------------------
# Grid / tile planning
# ---------------------------------------------------------------------------

def _plan_grid(batch, in_dim, hid_pad, x_bytes, w_bytes, budget):
    """Pick (block_b, n_steps) under the VMEM budget with minimal batch pad."""
    b_all = _round_up(batch, SUBLANE)
    in_vmem = _round_up(in_dim, LANE)     # lanes a VMEM row actually occupies
    hid_vmem = _round_up(hid_pad, LANE)

    # Resident parameters (worst case: double-buffered by the pipeline).
    w_resident = w_bytes * (_round_up(in_dim, SUBLANE) * hid_vmem
                            + _round_up(hid_pad, SUBLANE) * hid_vmem)
    vec_resident = 4 * SUBLANE * (2 * in_vmem + 6 * hid_vmem)
    param_bytes = 2 * (w_resident + vec_resident)
    if param_bytes > (budget * 4) // 5:
        # TODO(synk): add a hidden-dim (N/K) tiling grid axis with an f32
        # accumulator scratch instead of holding w1/w2 as single VMEM blocks.
        raise ValueError(
            f"hidden_dim too large for single-block weights: parameters need "
            f"~{param_bytes >> 20} MiB of VMEM, budget is {budget >> 20} MiB")

    # Per-row VMEM: double-buffered x/out tiles + ~6 live f32 intermediate
    # rows, + 30% headroom so the compiler does not spill at the largest tile.
    per_row = (2 * x_bytes * in_vmem + 2 * x_bytes * hid_vmem
               + 6 * 4 * max(in_vmem, hid_vmem))
    per_row = per_row * 13 // 10

    avail = budget - param_bytes
    cap = max(SUBLANE, min(MAX_BLOCK_B, (avail // per_row) // SUBLANE * SUBLANE))

    n_steps = _cdiv(b_all, cap)
    # Prefer >= 4 grid steps (2 TensorCores x per-core double-buffered DMA on
    # v7x) as long as each step still moves >= ~0.5 MiB of activation traffic.
    row_hbm = x_bytes * (in_dim + hid_pad)
    min_rows = min(cap, max(SUBLANE,
                            _round_up(_cdiv(MIN_STEP_BYTES, row_hbm), SUBLANE)))
    n_steps = max(n_steps, min(4, max(1, b_all // min_rows)))

    block_b = _round_up(_cdiv(b_all, n_steps), SUBLANE)
    n_steps = _cdiv(b_all, block_b)
    return block_b, n_steps, w_resident


# ---------------------------------------------------------------------------
# Wrapper
# ---------------------------------------------------------------------------

def _rep_map(i):
    return (0, 0)


def _batch_map(i):
    return (i, 0)


def _rep_spec(shape, single_buffer=False):
    """BlockSpec for a replicated (grid-invariant) parameter block.

    Large weight blocks are single-buffered: their block index never changes,
    so double-buffering only wastes VMEM that could instead grow block_b.
    """
    if single_buffer and hasattr(pl, "Buffered"):
        try:
            return pl.BlockSpec(shape, _rep_map, pipeline_mode=pl.Buffered(1))
        except TypeError:   # older jax without pipeline_mode support
            pass
    return pl.BlockSpec(shape, _rep_map)


@functools.partial(jax.jit, static_argnames=("block_b", "matmul_dtype"))
def mlp_base_forward(x, params, block_b=None, matmul_dtype=jnp.bfloat16):
    """MLPBase forward via a single Pallas kernel, tiled over the batch."""
    B, in_dim = x.shape
    hidden_dim = params["w1"].shape[1]
    x_bytes = x.dtype.itemsize
    w_bytes = jnp.dtype(matmul_dtype).itemsize

    # Hidden/output features: lane-dense (multiple of 128) only when the extra
    # columns cost <= 50% more output HBM traffic; otherwise keep the logical
    # width (Mosaic masks the partial lanes; the kernel is HBM-bound).
    hid_pad = _round_up(hidden_dim, LANE)
    if hid_pad - hidden_dim > hidden_dim // 2:
        hid_pad = hidden_dim

    budget = _vmem_budget_bytes()
    if block_b is None:
        block_b, n_steps, w_resident = _plan_grid(
            B, in_dim, hid_pad, x_bytes, w_bytes, budget)
    else:
        block_b = _round_up(block_b, SUBLANE)
        n_steps = _cdiv(_round_up(B, SUBLANE), block_b)
        w_resident = w_bytes * (
            _round_up(in_dim, SUBLANE) * _round_up(hid_pad, LANE)
            + _round_up(hid_pad, SUBLANE) * _round_up(hid_pad, LANE))
    b_pad = n_steps * block_b

    # Batch padded by < block_b (typically < 8 rows/step); the feature dim of
    # x is never padded in HBM — the x BlockSpec last dim is the full in_dim.
    x_p = x if b_pad == B else jnp.pad(x, ((0, b_pad - B), (0, 0)))

    def pad_cols(a, cols):
        return a if a.shape[1] == cols else jnp.pad(a, ((0, 0), (0, cols - a.shape[1])))

    def pad_mat(a, rows, cols):
        if a.shape == (rows, cols):
            return a
        return jnp.pad(a, ((0, rows - a.shape[0]), (0, cols - a.shape[1])))

    ln0_w, ln0_b = params["ln0_w"], params["ln0_b"]
    w1 = pad_mat(params["w1"], in_dim, hid_pad).astype(matmul_dtype)
    w2 = pad_mat(params["w2"], hid_pad, hid_pad).astype(matmul_dtype)
    b1 = pad_cols(params["b1"], hid_pad)
    b2 = pad_cols(params["b2"], hid_pad)
    ln1_w = pad_cols(params["ln1_w"], hid_pad)
    ln1_b = pad_cols(params["ln1_b"], hid_pad)
    ln2_w = pad_cols(params["ln2_w"], hid_pad)
    ln2_b = pad_cols(params["ln2_b"], hid_pad)

    single_w = w_resident > SINGLE_BUFFER_BYTES

    in_specs = [
        pl.BlockSpec((block_b, in_dim), _batch_map),                 # x
        _rep_spec((1, in_dim)),                                      # ln0 gamma
        _rep_spec((1, in_dim)),                                      # ln0 beta
        _rep_spec((in_dim, hid_pad), single_buffer=single_w),        # w1
        _rep_spec((1, hid_pad)),                                     # b1
        _rep_spec((1, hid_pad)),                                     # ln1 gamma
        _rep_spec((1, hid_pad)),                                     # ln1 beta
        _rep_spec((hid_pad, hid_pad), single_buffer=single_w),       # w2
        _rep_spec((1, hid_pad)),                                     # b2
        _rep_spec((1, hid_pad)),                                     # ln2 gamma
        _rep_spec((1, hid_pad)),                                     # ln2 beta
    ]
    out_spec = pl.BlockSpec((block_b, hid_pad), _batch_map)

    param_hbm = (w1.size * w1.dtype.itemsize + w2.size * w2.dtype.itemsize
                 + 4 * (2 * in_dim + 6 * hid_pad))
    cost = pl.CostEstimate(
        flops=int(2 * b_pad * hid_pad * (in_dim + hid_pad)),
        transcendentals=int(2 * b_pad * hid_pad + 3 * b_pad),
        bytes_accessed=int(b_pad * in_dim * x_bytes
                           + b_pad * hid_pad * x_bytes + param_hbm),
    )

    kernel = functools.partial(mlp_base_kernel, hidden_dim=hidden_dim)

    out = pl.pallas_call(
        kernel,
        out_shape=jax.ShapeDtypeStruct((b_pad, hid_pad), x.dtype),
        grid_spec=pl.GridSpec(
            grid=(n_steps,),
            in_specs=in_specs,
            out_specs=out_spec,
        ),
        compiler_params=pltpu.CompilerParams(
            dimension_semantics=("parallel",),
            vmem_limit_bytes=int(budget),
        ),
        cost_estimate=cost,
    )(
        x_p,
        ln0_w, ln0_b,
        w1, b1, ln1_w, ln1_b,
        w2, b2, ln2_w, ln2_b,
    )

    # Strip batch/feature padding (skipped entirely when there was none).
    if b_pad != B or hid_pad != hidden_dim:
        out = out[:B, :hidden_dim]
    return out


# ---------------------------------------------------------------------------
# Init + reference
# ---------------------------------------------------------------------------

def init_params(key, input_dim, hidden_dim):
    """Deterministic init matching the module: xavier_uniform(gain=sqrt(2))
    for Linear weights, zeros for Linear biases, ones/zeros for LayerNorm."""
    k1, k2 = jax.random.split(key)
    gain = jnp.sqrt(2.0)  # nn.init.calculate_gain('relu')

    def xavier_uniform(k, fan_in, fan_out):
        bound = gain * jnp.sqrt(6.0 / (fan_in + fan_out))
        return jax.random.uniform(
            k, (fan_in, fan_out), jnp.float32, minval=-bound, maxval=bound)

    return {
        "ln0_w": jnp.ones((1, input_dim), jnp.float32),
        "ln0_b": jnp.zeros((1, input_dim), jnp.float32),
        "w1": xavier_uniform(k1, input_dim, hidden_dim),
        "b1": jnp.zeros((1, hidden_dim), jnp.float32),
        "ln1_w": jnp.ones((1, hidden_dim), jnp.float32),
        "ln1_b": jnp.zeros((1, hidden_dim), jnp.float32),
        "w2": xavier_uniform(k2, hidden_dim, hidden_dim),
        "b2": jnp.zeros((1, hidden_dim), jnp.float32),
        "ln2_w": jnp.ones((1, hidden_dim), jnp.float32),
        "ln2_b": jnp.zeros((1, hidden_dim), jnp.float32),
    }


def _layernorm_ref(h, gamma, beta):
    mu = jnp.mean(h, axis=-1, keepdims=True)
    var = jnp.mean((h - mu) * (h - mu), axis=-1, keepdims=True)
    return (h - mu) * jax.lax.rsqrt(var + LN_EPS) * gamma + beta


def reference_forward(x, p, matmul_dtype=jnp.float32):
    """Plain-JAX reference mirroring the PyTorch forward (Tanh activation)."""
    f32 = jnp.float32
    h = _layernorm_ref(x.astype(f32), p["ln0_w"], p["ln0_b"])
    h = jnp.dot(h.astype(matmul_dtype), p["w1"].astype(matmul_dtype),
                preferred_element_type=f32) + p["b1"]
    h = _layernorm_ref(jnp.tanh(h), p["ln1_w"], p["ln1_b"])
    h = jnp.dot(h.astype(matmul_dtype), p["w2"].astype(matmul_dtype),
                preferred_element_type=f32) + p["b2"]
    h = _layernorm_ref(jnp.tanh(h), p["ln2_w"], p["ln2_b"])
    return h


if __name__ == "__main__":
    key = jax.random.PRNGKey(0)

    # Case 1: module-default-like small shapes, exact f32 matmuls.
    batch, input_dim, hidden_dim = 8, 32, 32
    kx, kp, key = jax.random.split(key, 3)
    x = jax.random.normal(kx, (batch, input_dim), jnp.float32)
    params = init_params(kp, input_dim, hidden_dim)

    out = jax.block_until_ready(
        mlp_base_forward(x, params, matmul_dtype=jnp.float32))
    ref = reference_forward(x, params, matmul_dtype=jnp.float32)
    assert out.shape == (batch, hidden_dim)
    assert jnp.allclose(out, ref, atol=1e-4, rtol=1e-4), "mismatch (case 1)"

    # Case 2: ragged batch / feature dims + explicit block_b -> multi-step
    # grid with batch padding, bf16 matmul operands (default).
    batch2, input_dim2, hidden_dim2 = 50, 20, 32
    kx2, kp2, key = jax.random.split(key, 3)
    x2 = jax.random.normal(kx2, (batch2, input_dim2), jnp.float32)
    params2 = init_params(kp2, input_dim2, hidden_dim2)

    out2 = jax.block_until_ready(mlp_base_forward(x2, params2, block_b=16))
    ref2 = reference_forward(x2, params2, matmul_dtype=jnp.bfloat16)
    ref2_f32 = reference_forward(x2, params2, matmul_dtype=jnp.float32)
    assert out2.shape == (batch2, hidden_dim2)
    assert jnp.allclose(out2, ref2, atol=2e-3, rtol=2e-3), "mismatch (case 2)"
    assert jnp.allclose(out2, ref2_f32, atol=1e-1, rtol=1e-1), "bf16 sanity (case 2)"

    # Case 3: hidden_dim not a multiple of 128 but close enough to lane-pad
    # (96 -> 128) -> exercises zero pad lanes in the hidden LayerNorms.
    batch3, input_dim3, hidden_dim3 = 24, 40, 96
    kx3, kp3 = jax.random.split(key)
    x3 = jax.random.normal(kx3, (batch3, input_dim3), jnp.float32)
    params3 = init_params(kp3, input_dim3, hidden_dim3)

    out3 = jax.block_until_ready(mlp_base_forward(x3, params3))
    ref3 = reference_forward(x3, params3, matmul_dtype=jnp.bfloat16)
    assert out3.shape == (batch3, hidden_dim3)
    assert jnp.allclose(out3, ref3, atol=2e-3, rtol=2e-3), "mismatch (case 3)"

    print("KERNEL_OK")
</pallas_src>

<mosaic_0001>
module attributes {stable_mosaic.version = 11 : i64} {
  func.func @mlp_base_kernel(%arg0: i32, %arg1: memref<8x32xf32, #tpu.memory_space<vmem>>, %arg2: memref<1x32xf32, #tpu.memory_space<vmem>>, %arg3: memref<1x32xf32, #tpu.memory_space<vmem>>, %arg4: memref<32x32xf32, #tpu.memory_space<vmem>>, %arg5: memref<1x32xf32, #tpu.memory_space<vmem>>, %arg6: memref<1x32xf32, #tpu.memory_space<vmem>>, %arg7: memref<1x32xf32, #tpu.memory_space<vmem>>, %arg8: memref<32x32xf32, #tpu.memory_space<vmem>>, %arg9: memref<1x32xf32, #tpu.memory_space<vmem>>, %arg10: memref<1x32xf32, #tpu.memory_space<vmem>>, %arg11: memref<1x32xf32, #tpu.memory_space<vmem>>, %arg12: memref<8x32xf32, #tpu.memory_space<vmem>>) attributes {dimension_semantics = [#tpu.dimension_semantics<parallel>], iteration_bounds = array<i64: 1>, scalar_prefetch = 0 : i64, scratch_operands = 0 : i64, tpu.core_type = #tpu.core_type<tc>, window_params = [{transform_indices = @transform_0, window_bounds = array<i64: 8, 32>}, {pipeline_mode = #tpu.pipeline_mode<synchronous>, transform_indices = @transform_1, window_bounds = array<i64: 1, 32>}, {pipeline_mode = #tpu.pipeline_mode<synchronous>, transform_indices = @transform_2, window_bounds = array<i64: 1, 32>}, {pipeline_mode = #tpu.pipeline_mode<synchronous>, transform_indices = @transform_3, window_bounds = array<i64: 32, 32>}, {pipeline_mode = #tpu.pipeline_mode<synchronous>, transform_indices = @transform_4, window_bounds = array<i64: 1, 32>}, {pipeline_mode = #tpu.pipeline_mode<synchronous>, transform_indices = @transform_5, window_bounds = array<i64: 1, 32>}, {pipeline_mode = #tpu.pipeline_mode<synchronous>, transform_indices = @transform_6, window_bounds = array<i64: 1, 32>}, {pipeline_mode = #tpu.pipeline_mode<synchronous>, transform_indices = @transform_7, window_bounds = array<i64: 32, 32>}, {pipeline_mode = #tpu.pipeline_mode<synchronous>, transform_indices = @transform_8, window_bounds = array<i64: 1, 32>}, {pipeline_mode = #tpu.pipeline_mode<synchronous>, transform_indices = @transform_9, window_bounds = array<i64: 1, 32>}, {pipeline_mode = #tpu.pipeline_mode<synchronous>, transform_indices = @transform_10, window_bounds = array<i64: 1, 32>}, {transform_indices = @transform_11, window_bounds = array<i64: 8, 32>}]} {
    %c0 = arith.constant 0 : index
    %c0_0 = arith.constant 0 : index
    %0 = vector.load %arg1[%c0, %c0_0] : memref<8x32xf32, #tpu.memory_space<vmem>>, vector<8x32xf32>
    %cst = arith.constant dense<0.000000e+00> : vector<8xf32>
    %1 = vector.multi_reduction <add>, %0, %cst [1] : vector<8x32xf32> to vector<8xf32>
    %2 = vector.shape_cast %1 : vector<8xf32> to vector<8x1xf32>
    %cst_1 = arith.constant 3.200000e+01 : f32
    %3 = vector.broadcast %cst_1 : f32 to vector<8x1xf32>
    %4 = arith.divf %2, %3 : vector<8x1xf32>
    %5 = vector.broadcast %4 : vector<8x1xf32> to vector<8x32xf32>
    %6 = arith.subf %0, %5 : vector<8x32xf32>
    %7 = arith.mulf %6, %6 : vector<8x32xf32>
    %cst_2 = arith.constant dense<0.000000e+00> : vector<8xf32>
    %8 = vector.multi_reduction <add>, %7, %cst_2 [1] : vector<8x32xf32> to vector<8xf32>
    %9 = vector.shape_cast %8 : vector<8xf32> to vector<8x1xf32>
    %cst_3 = arith.constant 3.200000e+01 : f32
    %10 = vector.broadcast %cst_3 : f32 to vector<8x1xf32>
    %11 = arith.divf %9, %10 : vector<8x1xf32>
    %cst_4 = arith.constant 9.99999974E-6 : f32
    %12 = vector.broadcast %cst_4 : f32 to vector<8x1xf32>
    %13 = arith.addf %11, %12 : vector<8x1xf32>
    %14 = math.rsqrt %13 : vector<8x1xf32>
    %15 = vector.broadcast %14 : vector<8x1xf32> to vector<8x32xf32>
    %16 = arith.mulf %6, %15 : vector<8x32xf32>
    %c0_5 = arith.constant 0 : index
    %c0_6 = arith.constant 0 : index
    %17 = vector.load %arg2[%c0_5, %c0_6] : memref<1x32xf32, #tpu.memory_space<vmem>>, vector<1x32xf32>
    %18 = vector.broadcast %17 : vector<1x32xf32> to vector<8x32xf32>
    %19 = arith.mulf %16, %18 : vector<8x32xf32>
    %c0_7 = arith.constant 0 : index
    %c0_8 = arith.constant 0 : index
    %20 = vector.load %arg3[%c0_7, %c0_8] : memref<1x32xf32, #tpu.memory_space<vmem>>, vector<1x32xf32>
    %21 = vector.broadcast %20 : vector<1x32xf32> to vector<8x32xf32>
    %22 = arith.addf %19, %21 : vector<8x32xf32>
    %c0_9 = arith.constant 0 : index
    %c0_10 = arith.constant 0 : index
    %23 = vector.load %arg4[%c0_9, %c0_10] : memref<32x32xf32, #tpu.memory_space<vmem>>, vector<32x32xf32>
    %cst_11 = arith.constant dense<0.000000e+00> : vector<8x32xf32>
    %24 = tpu.matmul %22, %23, %cst_11 {dimension_numbers = #tpu.dot_dimension_numbers<[1], [0], [0], [1], [0, 0, 1, 1], [], []>} : vector<8x32xf32>, vector<32x32xf32>, vector<8x32xf32> -> vector<8x32xf32>
    %c0_12 = arith.constant 0 : index
    %c0_13 = arith.constant 0 : index
    %25 = vector.load %arg5[%c0_12, %c0_13] : memref<1x32xf32, #tpu.memory_space<vmem>>, vector<1x32xf32>
    %26 = vector.broadcast %25 : vector<1x32xf32> to vector<8x32xf32>
    %27 = arith.addf %24, %26 : vector<8x32xf32>
    %28 = math.tanh %27 : vector<8x32xf32>
    %c0_14 = arith.constant 0 : index
    %c0_15 = arith.constant 0 : index
    %29 = vector.load %arg6[%c0_14, %c0_15] : memref<1x32xf32, #tpu.memory_space<vmem>>, vector<1x32xf32>
    %c0_16 = arith.constant 0 : index
    %c0_17 = arith.constant 0 : index
    %30 = vector.load %arg7[%c0_16, %c0_17] : memref<1x32xf32, #tpu.memory_space<vmem>>, vector<1x32xf32>
    %cst_18 = arith.constant dense<0.000000e+00> : vector<8xf32>
    %31 = vector.multi_reduction <add>, %28, %cst_18 [1] : vector<8x32xf32> to vector<8xf32>
    %32 = vector.shape_cast %31 : vector<8xf32> to vector<8x1xf32>
    %cst_19 = arith.constant 3.125000e-02 : f32
    %33 = vector.broadcast %cst_19 : f32 to vector<8x1xf32>
    %34 = arith.mulf %32, %33 : vector<8x1xf32>
    %35 = arith.mulf %28, %28 : vector<8x32xf32>
    %cst_20 = arith.constant dense<0.000000e+00> : vector<8xf32>
    %36 = vector.multi_reduction <add>, %35, %cst_20 [1] : vector<8x32xf32> to vector<8xf32>
    %37 = vector.shape_cast %36 : vector<8xf32> to vector<8x1xf32>
    %cst_21 = arith.constant 3.125000e-02 : f32
    %38 = vector.broadcast %cst_21 : f32 to vector<8x1xf32>
    %39 = arith.mulf %37, %38 : vector<8x1xf32>
    %40 = arith.mulf %34, %34 : vector<8x1xf32>
    %41 = arith.subf %39, %40 : vector<8x1xf32>
    %cst_22 = arith.constant 0.000000e+00 : f32
    %42 = vector.broadcast %cst_22 : f32 to vector<8x1xf32>
    %43 = arith.maximumf %41, %42 : vector<8x1xf32>
    %44 = vector.broadcast %34 : vector<8x1xf32> to vector<8x32xf32>
    %45 = arith.subf %28, %44 : vector<8x32xf32>
    %cst_23 = arith.constant 9.99999974E-6 : f32
    %46 = vector.broadcast %cst_23 : f32 to vector<8x1xf32>
    %47 = arith.addf %43, %46 : vector<8x1xf32>
    %48 = math.rsqrt %47 : vector<8x1xf32>
    %49 = vector.broadcast %48 : vector<8x1xf32> to vector<8x32xf32>
    %50 = arith.mulf %45, %49 : vector<8x32xf32>
    %51 = vector.broadcast %29 : vector<1x32xf32> to vector<8x32xf32>
    %52 = arith.mulf %50, %51 : vector<8x32xf32>
    %53 = vector.broadcast %30 : vector<1x32xf32> to vector<8x32xf32>
    %54 = arith.addf %52, %53 : vector<8x32xf32>
    %c0_24 = arith.constant 0 : index
    %c0_25 = arith.constant 0 : index
    %55 = vector.load %arg8[%c0_24, %c0_25] : memref<32x32xf32, #tpu.memory_space<vmem>>, vector<32x32xf32>
    %cst_26 = arith.constant dense<0.000000e+00> : vector<8x32xf32>
    %56 = tpu.matmul %54, %55, %cst_26 {dimension_numbers = #tpu.dot_dimension_numbers<[1], [0], [0], [1], [0, 0, 1, 1], [], []>} : vector<8x32xf32>, vector<32x32xf32>, vector<8x32xf32> -> vector<8x32xf32>
    %c0_27 = arith.constant 0 : index
    %c0_28 = arith.constant 0 : index
    %57 = vector.load %arg9[%c0_27, %c0_28] : memref<1x32xf32, #tpu.memory_space<vmem>>, vector<1x32xf32>
    %58 = vector.broadcast %57 : vector<1x32xf32> to vector<8x32xf32>
    %59 = arith.addf %56, %58 : vector<8x32xf32>
    %60 = math.tanh %59 : vector<8x32xf32>
    %c0_29 = arith.constant 0 : index
    %c0_30 = arith.constant 0 : index
    %61 = vector.load %arg10[%c0_29, %c0_30] : memref<1x32xf32, #tpu.memory_space<vmem>>, vector<1x32xf32>
    %c0_31 = arith.constant 0 : index
    %c0_32 = arith.constant 0 : index
    %62 = vector.load %arg11[%c0_31, %c0_32] : memref<1x32xf32, #tpu.memory_space<vmem>>, vector<1x32xf32>
    %cst_33 = arith.constant dense<0.000000e+00> : vector<8xf32>
    %63 = vector.multi_reduction <add>, %60, %cst_33 [1] : vector<8x32xf32> to vector<8xf32>
    %64 = vector.shape_cast %63 : vector<8xf32> to vector<8x1xf32>
    %cst_34 = arith.constant 3.125000e-02 : f32
    %65 = vector.broadcast %cst_34 : f32 to vector<8x1xf32>
    %66 = arith.mulf %64, %65 : vector<8x1xf32>
    %67 = arith.mulf %60, %60 : vector<8x32xf32>
    %cst_35 = arith.constant dense<0.000000e+00> : vector<8xf32>
    %68 = vector.multi_reduction <add>, %67, %cst_35 [1] : vector<8x32xf32> to vector<8xf32>
    %69 = vector.shape_cast %68 : vector<8xf32> to vector<8x1xf32>
    %cst_36 = arith.constant 3.125000e-02 : f32
    %70 = vector.broadcast %cst_36 : f32 to vector<8x1xf32>
    %71 = arith.mulf %69, %70 : vector<8x1xf32>
    %72 = arith.mulf %66, %66 : vector<8x1xf32>
    %73 = arith.subf %71, %72 : vector<8x1xf32>
    %cst_37 = arith.constant 0.000000e+00 : f32
    %74 = vector.broadcast %cst_37 : f32 to vector<8x1xf32>
    %75 = arith.maximumf %73, %74 : vector<8x1xf32>
    %76 = vector.broadcast %66 : vector<8x1xf32> to vector<8x32xf32>
    %77 = arith.subf %60, %76 : vector<8x32xf32>
    %cst_38 = arith.constant 9.99999974E-6 : f32
    %78 = vector.broadcast %cst_38 : f32 to vector<8x1xf32>
    %79 = arith.addf %75, %78 : vector<8x1xf32>
    %80 = math.rsqrt %79 : vector<8x1xf32>
    %81 = vector.broadcast %80 : vector<8x1xf32> to vector<8x32xf32>
    %82 = arith.mulf %77, %81 : vector<8x32xf32>
    %83 = vector.broadcast %61 : vector<1x32xf32> to vector<8x32xf32>
    %84 = arith.mulf %82, %83 : vector<8x32xf32>
    %85 = vector.broadcast %62 : vector<1x32xf32> to vector<8x32xf32>
    %86 = arith.addf %84, %85 : vector<8x32xf32>
    %c0_39 = arith.constant 0 : index
    %c0_40 = arith.constant 0 : index
    %87 = vector.load %arg12[%c0_39, %c0_40] : memref<8x32xf32, #tpu.memory_space<vmem>>, vector<8x32xf32>
    tpu.vector_store %arg12[%c0_39, %c0_40], %86 {strides = array<i32>} : memref<8x32xf32, #tpu.memory_space<vmem>>, vector<8x32xf32>,
    return
  }
  func.func @transform_0(%arg0: i32) -> (i32, i32) {
    %c0_i32 = arith.constant 0 : i32
    %c0_i32_0 = arith.constant 0 : i32
    return %arg0, %c0_i32 : i32, i32
  }
  func.func @transform_1(%arg0: i32) -> (i32, i32) {
    %c0_i32 = arith.constant 0 : i32
    %c0_i32_0 = arith.constant 0 : i32
    %c0_i32_1 = arith.constant 0 : i32
    return %c0_i32, %c0_i32_0 : i32, i32
  }
  func.func @transform_2(%arg0: i32) -> (i32, i32) {
    %c0_i32 = arith.constant 0 : i32
    %c0_i32_0 = arith.constant 0 : i32
    %c0_i32_1 = arith.constant 0 : i32
    return %c0_i32, %c0_i32_0 : i32, i32
  }
  func.func @transform_3(%arg0: i32) -> (i32, i32) {
    %c0_i32 = arith.constant 0 : i32
    %c0_i32_0 = arith.constant 0 : i32
    %c0_i32_1 = arith.constant 0 : i32
    return %c0_i32, %c0_i32_0 : i32, i32
  }
  func.func @transform_4(%arg0: i32) -> (i32, i32) {
    %c0_i32 = arith.constant 0 : i32
    %c0_i32_0 = arith.constant 0 : i32
    %c0_i32_1 = arith.constant 0 : i32
    return %c0_i32, %c0_i32_0 : i32, i32
  }
  func.func @transform_5(%arg0: i32) -> (i32, i32) {
    %c0_i32 = arith.constant 0 : i32
    %c0_i32_0 = arith.constant 0 : i32
    %c0_i32_1 = arith.constant 0 : i32
    return %c0_i32, %c0_i32_0 : i32, i32
  }
  func.func @transform_6(%arg0: i32) -> (i32, i32) {
    %c0_i32 = arith.constant 0 : i32
    %c0_i32_0 = arith.constant 0 : i32
    %c0_i32_1 = arith.constant 0 : i32
    return %c0_i32, %c0_i32_0 : i32, i32
  }
  func.func @transform_7(%arg0: i32) -> (i32, i32) {
    %c0_i32 = arith.constant 0 : i32
    %c0_i32_0 = arith.constant 0 : i32
    %c0_i32_1 = arith.constant 0 : i32
    return %c0_i32, %c0_i32_0 : i32, i32
  }
  func.func @transform_8(%arg0: i32) -> (i32, i32) {
    %c0_i32 = arith.constant 0 : i32
    %c0_i32_0 = arith.constant 0 : i32
    %c0_i32_1 = arith.constant 0 : i32
    return %c0_i32, %c0_i32_0 : i32, i32
  }
  func.func @transform_9(%arg0: i32) -> (i32, i32) {
    %c0_i32 = arith.constant 0 : i32
    %c0_i32_0 = arith.constant 0 : i32
    %c0_i32_1 = arith.constant 0 : i32
    return %c0_i32, %c0_i32_0 : i32, i32
  }
  func.func @transform_10(%arg0: i32) -> (i32, i32) {
    %c0_i32 = arith.constant 0 : i32
    %c0_i32_0 = arith.constant 0 : i32
    %c0_i32_1 = arith.constant 0 : i32
    return %c0_i32, %c0_i32_0 : i32, i32
  }
  func.func @transform_11(%arg0: i32) -> (i32, i32) {
    %c0_i32 = arith.constant 0 : i32
    %c0_i32_0 = arith.constant 0 : i32
    return %arg0, %c0_i32 : i32, i32
  }
}

</mosaic_0001>

<llo_original>
// kernel: mlp_base_forward.1
$region0: #{mlp_base_forward.1}
  #allocation0 [shape = 'u32[]', space=smem, size = 0x4, offset = 0x4, fixed_abs, tag = 'smem constant byte address 0x4 - core index']
  #allocation1 [shape = 'u32[72,128]{1,0:T(1,128)}', space=vmem, size = 0x9000, scoped, tag = 'internal scratch']
  %s0 = inlined_call_operand.hbm [shape: f32[8,32], index: 0, kind: input, shape index: {}]
  %s1 = inlined_call_operand.vmem [shape: f32[1,32], index: 1, kind: input, shape index: {}]
  %s2 = inlined_call_operand.vmem [shape: f32[1,32], index: 2, kind: input, shape index: {}]
  %s3 = inlined_call_operand.hbm [shape: f32[32,32], index: 3, kind: input, shape index: {}]
  %s4 = inlined_call_operand.hbm [shape: f32[1,32], index: 4, kind: input, shape index: {}]
  %s5 = inlined_call_operand.vmem [shape: f32[1,32], index: 5, kind: input, shape index: {}]
  %s6 = inlined_call_operand.vmem [shape: f32[1,32], index: 6, kind: input, shape index: {}]
  %s7 = inlined_call_operand.hbm [shape: f32[32,32], index: 7, kind: input, shape index: {}]
  %s8 = inlined_call_operand.hbm [shape: f32[1,32], index: 8, kind: input, shape index: {}]
  %s9 = inlined_call_operand.vmem [shape: f32[1,32], index: 9, kind: input, shape index: {}]
  %s10 = inlined_call_operand.vmem [shape: f32[1,32], index: 10, kind: input, shape index: {}]
  %s11 = inlined_call_operand.hbm [shape: f32[8,32], index: 11, kind: output, shape index: {}]
  %s12 = sld [smem:[#allocation0]]
  $region74: #{mlp_base_forward.1} parent=0
    _
  %s14 = ssub.s32 1, %s12
  %s15 = scalar_select 0, %s14, %s12
  $region1: #{mlp_base_forward.1} parent=0
    #allocation2 [shape = 'u8[4096]{0}', space=vmem, size = 0x1000, scoped, tag = 'input window, operand 0, single buffered']
    #allocation3 [shape = 's32[1]{0}', space=sflag, size = 0x4, scoped, tag = 'scoped memory for mlp_base_forward.1']
    #allocation4 [shape = 's32[1]{0}', space=sflag, size = 0x4, scoped, tag = 'scoped memory for mlp_base_forward.1']
    #allocation5 [shape = 'u8[16384]{0}', space=vmem, size = 0x4000, scoped, tag = 'input window, operand 3, single buffered']
    #allocation6 [shape = 's32[1]{0}', space=sflag, size = 0x4, scoped, tag = 'scoped memory for mlp_base_forward.1']
    #allocation7 [shape = 'u8[512]{0}', space=vmem, size = 0x400, scoped, tag = 'input window, operand 4, single buffered']
    #allocation8 [shape = 'u8[16384]{0}', space=vmem, size = 0x4000, scoped, tag = 'input window, operand 7, single buffered']
    #allocation9 [shape = 's32[1]{0}', space=sflag, size = 0x4, scoped, tag = 'scoped memory for mlp_base_forward.1']
    #allocation10 [shape = 'u8[512]{0}', space=vmem, size = 0x400, scoped, tag = 'input window, operand 8, single buffered']
    #allocation11 [shape = 'u8[4096]{0}', space=vmem, size = 0x1000, scoped, tag = 'output window, operand 0, single buffered']
    %16 = vsyncpa [#allocation3], 0
    %17 = vsyncpa [#allocation6], 0
    %18 = vsyncpa [#allocation9], 0
    %19 = vsyncpa [#allocation4], 0
    // Predicated region
    $region2: #{mlp_base_forward.1} parent=1 // pred_check
      _
    $region3: #{mlp_base_forward.1} parent=1 // pred_check_branch
      %21 = sbr.rel (0) target = $region5
    $region4: #{mlp_base_forward.1} parent=1 // pred_region
      %23 = vsyncadd [#allocation3], 0
      %s25 = sshll.u32 %s0, 4
      %s26 = int_to_ptr.hbm [resolvable:$true] %s25
      %s27 = sshll.u32 [#allocation2], 4
      %s28 = int_to_ptr.vmem [resolvable:$true] %s27
      %30 = dma.hbm_to_vmem [thread:$0]  %s26, 128, %s28, [#allocation3]
    $region5: #{mlp_base_forward.1} parent=1 // pred_fallthru
      _
    // Predicated region
    $region6: #{mlp_base_forward.1} parent=1 // pred_check
      _
    $region7: #{mlp_base_forward.1} parent=1 // pred_check_branch
      %32 = sbr.rel (0) target = $region9
    $region8: #{mlp_base_forward.1} parent=1 // pred_region
      _
    $region9: #{mlp_base_forward.1} parent=1 // pred_fallthru
      _
    // Predicated region
    $region10: #{mlp_base_forward.1} parent=1 // pred_check
      _
    $region11: #{mlp_base_forward.1} parent=1 // pred_check_branch
      %34 = sbr.rel (0) target = $region13
    $region12: #{mlp_base_forward.1} parent=1 // pred_region
      _
    $region13: #{mlp_base_forward.1} parent=1 // pred_fallthru
      _
    // Predicated region
    $region14: #{mlp_base_forward.1} parent=1 // pred_check
      _
    $region15: #{mlp_base_forward.1} parent=1 // pred_check_branch
      %36 = sbr.rel (0) target = $region17
    $region16: #{mlp_base_forward.1} parent=1 // pred_region
      %38 = vsyncadd [#allocation6], 0
      %s39 = sshll.u32 %s3, 4
      %s40 = int_to_ptr.hbm [resolvable:$true] %s39
      %s41 = sshll.u32 [#allocation5], 4
      %s42 = int_to_ptr.vmem [resolvable:$true] %s41
      %47 = dma.hbm_to_vmem [thread:$0]  %s40, 512, %s42, [#allocation6], 128, 128, 8
    $region17: #{mlp_base_forward.1} parent=1 // pred_fallthru
      _
    // Predicated region
    $region18: #{mlp_base_forward.1} parent=1 // pred_check
      _
    $region19: #{mlp_base_forward.1} parent=1 // pred_check_branch
      %49 = sbr.rel (0) target = $region21
    $region20: #{mlp_base_forward.1} parent=1 // pred_region
      %51 = vsyncadd [#allocation6], 0
      %s53 = sshll.u32 %s4, 4
      %s54 = int_to_ptr.hbm [resolvable:$true] %s53
      %s55 = sshll.u32 [#allocation7], 4
      %s56 = int_to_ptr.vmem [resolvable:$true] %s55
      %58 = dma.hbm_to_vmem [thread:$0]  %s54, 16, %s56, [#allocation6]
    $region21: #{mlp_base_forward.1} parent=1 // pred_fallthru
      _
    // Predicated region
    $region22: #{mlp_base_forward.1} parent=1 // pred_check
      _
    $region23: #{mlp_base_forward.1} parent=1 // pred_check_branch
      %60 = sbr.rel (0) target = $region25
    $region24: #{mlp_base_forward.1} parent=1 // pred_region
      _
    $region25: #{mlp_base_forward.1} parent=1 // pred_fallthru
      _
    // Predicated region
    $region26: #{mlp_base_forward.1} parent=1 // pred_check
      _
    $region27: #{mlp_base_forward.1} parent=1 // pred_check_branch
      %62 = sbr.rel (0) target = $region29
    $region28: #{mlp_base_forward.1} parent=1 // pred_region
      _
    $region29: #{mlp_base_forward.1} parent=1 // pred_fallthru
      _
    // Predicated region
    $region30: #{mlp_base_forward.1} parent=1 // pred_check
      _
    $region31: #{mlp_base_forward.1} parent=1 // pred_check_branch
      %64 = sbr.rel (0) target = $region33
    $region32: #{mlp_base_forward.1} parent=1 // pred_region
      %66 = vsyncadd [#allocation9], 0
      %s67 = sshll.u32 %s7, 4
      %s68 = int_to_ptr.hbm [resolvable:$true] %s67
      %s69 = sshll.u32 [#allocation8], 4
      %s70 = int_to_ptr.vmem [resolvable:$true] %s69
      %75 = dma.hbm_to_vmem [thread:$0]  %s68, 512, %s70, [#allocation9], 128, 128, 8
    $region33: #{mlp_base_forward.1} parent=1 // pred_fallthru
      _
    // Predicated region
    $region34: #{mlp_base_forward.1} parent=1 // pred_check
      _
    $region35: #{mlp_base_forward.1} parent=1 // pred_check_branch
      %77 = sbr.rel (0) target = $region37
    $region36: #{mlp_base_forward.1} parent=1 // pred_region
      %79 = vsyncadd [#allocation9], 0
      %s81 = sshll.u32 %s8, 4
      %s82 = int_to_ptr.hbm [resolvable:$true] %s81
      %s83 = sshll.u32 [#allocation10], 4
      %s84 = int_to_ptr.vmem [resolvable:$true] %s83
      %86 = dma.hbm_to_vmem [thread:$0]  %s82, 16, %s84, [#allocation9]
    $region37: #{mlp_base_forward.1} parent=1 // pred_fallthru
      _
    // Predicated region
    $region38: #{mlp_base_forward.1} parent=1 // pred_check
      _
    $region39: #{mlp_base_forward.1} parent=1 // pred_check_branch
      %88 = sbr.rel (0) target = $region41
    $region40: #{mlp_base_forward.1} parent=1 // pred_region
      _
    $region41: #{mlp_base_forward.1} parent=1 // pred_fallthru
      _
    // Predicated region
    $region42: #{mlp_base_forward.1} parent=1 // pred_check
      _
    $region43: #{mlp_base_forward.1} parent=1 // pred_check_branch
      %90 = sbr.rel (0) target = $region45
    $region44: #{mlp_base_forward.1} parent=1 // pred_region
      _
    $region45: #{mlp_base_forward.1} parent=1 // pred_fallthru
      _
    // Predicated region
    $region46: #{mlp_base_forward.1} parent=1 // pred_check
      _
    $region47: #{mlp_base_forward.1} parent=1 // pred_check_branch
      %92 = sbr.rel (0) target = $region49
    $region48: #{mlp_base_forward.1} parent=1 // pred_region
      %94 = dma.done [#allocation3], 128
    $region49: #{mlp_base_forward.1} parent=1 // pred_fallthru
      _
    // Predicated region
    $region50: #{mlp_base_forward.1} parent=1 // pred_check
      _
    $region51: #{mlp_base_forward.1} parent=1 // pred_check_branch
      %96 = sbr.rel (0) target = $region53
    $region52: #{mlp_base_forward.1} parent=1 // pred_region
      %98 = dma.done [#allocation6], 512
    $region53: #{mlp_base_forward.1} parent=1 // pred_fallthru
      _
    // Predicated region
    $region54: #{mlp_base_forward.1} parent=1 // pred_check
      _
    $region55: #{mlp_base_forward.1} parent=1 // pred_check_branch
      %100 = sbr.rel (0) target = $region57
    $region56: #{mlp_base_forward.1} parent=1 // pred_region
      %102 = dma.done [#allocation6], 16
    $region57: #{mlp_base_forward.1} parent=1 // pred_fallthru
      _
    // Predicated region
    $region58: #{mlp_base_forward.1} parent=1 // pred_check
      _
    $region59: #{mlp_base_forward.1} parent=1 // pred_check_branch
      %104 = sbr.rel (0) target = $region61
    $region60: #{mlp_base_forward.1} parent=1 // pred_region
      %106 = dma.done [#allocation9], 512
    $region61: #{mlp_base_forward.1} parent=1 // pred_fallthru
      _
    // Predicated region
    $region62: #{mlp_base_forward.1} parent=1 // pred_check
      _
    $region63: #{mlp_base_forward.1} parent=1 // pred_check_branch
      %108 = sbr.rel (0) target = $region65
    $region64: #{mlp_base_forward.1} parent=1 // pred_region
      %110 = dma.done [#allocation9], 16
    $region65: #{mlp_base_forward.1} parent=1 // pred_fallthru
      _
    %v111 = vld [vmem:[#allocation2] sm:$0xff]
    %vm112 = vcmask 261120
    %v113 = vsel %vm112, %v111, 0.0
    %114 = vadd.xlane.f32.xlu0 %v113
    %v115 = vpop.xlane.xlu0 %114
    %v116 = vrcp.pop 32.0
    %v117 = vmul.f32 32.0, %v116
    %v118 = vsub.f32 1.0, %v117
    %v119 = vmul.f32 %v116, %v118
    %v120 = vadd.f32 %v116, %v119
    %vm121 = vweird.f32 %v116
    %v122 = vsel %vm121, %v116, %v120
    %v123 = vmul.f32 %v115, %v122
    %v124 = vsub.f32 %v111, %v123
    %v125 = vmul.f32 %v124, %v124
    %v126 = vsel %vm112, %v125, 0.0
    %127 = vadd.xlane.f32.xlu0 %v126
    %v128 = vpop.xlane.xlu0 %127
    %v129 = vmul.f32 %v128, %v122
    %v130 = vadd.f32 %v129, 1e-05
    %v131 = vrsqrt.pop %v130
    %v132 = vmul.f32 %v131, %v130
    %v133 = vmul.f32 %v132, %v131
    %v134 = vmul.f32 0.5, %v133
    %v135 = vsub.f32 1.5, %v134
    %v136 = vmul.f32 %v131, %v135
    %vm137 = vweird.f32 %v130
    %vm138 = vweird.f32 %v131
    %vm139 = vmor %vm137, %vm138
    %v140 = vsel %vm139, %v131, %v136
    %v141 = vmul.f32 %v124, %v140
    %v142 = vld [vmem:[%s1] sm:$0x1]
    %v144 = vperm.slane %v142, 0
    %v146 = vmul.f32 %v141, %v144
    %v147 = vld [vmem:[%s2] sm:$0x1]
    %v149 = vperm.slane %v147, 0
    %v151 = vadd.f32 %v146, %v149
    %v152 = vld [vmem:[#allocation5] sm:$0xff]
    %v153 = vld [vmem:[#allocation5 + $0x8] sm:$0xff]
    %v154 = vld [vmem:[#allocation5 + $0x10] sm:$0xff]
    %v155 = vld [vmem:[#allocation5 + $0x18] sm:$0xff]
    %v156 = vld [vmem:[#allocation7] sm:$0x1]
    %v158 = vperm.slane %v156, 0
    %v161 = vsel %vm112, %v151, 0
    %163 = vmatpush.msra.mxu0 0.0
    %164 = vmatpush.msra.mxu0 0.0
    %165 = vmatpush.msra.mxu0 0.0
    %166 = vmatpush.msra.mxu0 0.0
    %167 = vmatpush.msra.mxu0 0.0
    %168 = vmatpush.msra.mxu0 0.0
    %169 = vmatpush.msra.mxu0 0.0
    %170 = vmatpush.msra.mxu0 0.0
    %171 = vmatpush.msra.mxu0 0.0
    %172 = vmatpush.msra.mxu0 0.0
    %173 = vmatpush.msra.mxu0 0.0
    %174 = vmatpush.msra.mxu0 0.0
    %175 = vmatpush.msra.mxu0 %v155
    %176 = vmatpush.msra.mxu0 %v154
    %177 = vmatpush.msra.mxu0 %v153
    %178 = vmatpush.msra.mxu0 %v152
    %179 = vmatmul.f32.gmra.mxu0 %v161
    %v180 = vpop.f32.mrf.mxu0
    %v181 = vadd.f32 %v158, %v180
    %182 = vdwg.mxu0
    %v183 = vtanh.pop %v181
    %v184 = vld [vmem:[%s5] sm:$0x1]
    %v185 = vld [vmem:[%s6] sm:$0x1]
    %v186 = vsel %vm112, %v183, 0.0
    %187 = vadd.xlane.f32.xlu0 %v186
    %v188 = vpop.xlane.xlu0 %187
    %v189 = vmul.f32 %v188, 0.03125
    %v190 = vmul.f32 %v183, %v183
    %v191 = vsel %vm112, %v190, 0.0
    %192 = vadd.xlane.f32.xlu0 %v191
    %v193 = vpop.xlane.xlu0 %192
    %v194 = vmul.f32 %v193, 0.03125
    %v195 = vmul.f32 %v189, %v189
    %v196 = vsub.f32 %v194, %v195
    %v197 = vmax.f32 %v196, 0.0
    %v198 = vsub.f32 %v183, %v189
    %v199 = vadd.f32 %v197, 1e-05
    %v200 = vrsqrt.pop %v199
    %v201 = vmul.f32 %v200, %v199
    %v202 = vmul.f32 %v201, %v200
    %v203 = vmul.f32 0.5, %v202
    %v204 = vsub.f32 1.5, %v203
    %v205 = vmul.f32 %v200, %v204
    %vm206 = vweird.f32 %v199
    %vm207 = vweird.f32 %v200
    %vm208 = vmor %vm206, %vm207
    %v209 = vsel %vm208, %v200, %v205
    %v210 = vmul.f32 %v198, %v209
    %v212 = vperm.slane %v184, 0
    %v214 = vmul.f32 %v210, %v212
    %v216 = vperm.slane %v185, 0
    %v218 = vadd.f32 %v214, %v216
    %v219 = vld [vmem:[#allocation8] sm:$0xff]
    %v220 = vld [vmem:[#allocation8 + $0x8] sm:$0xff]
    %v221 = vld [vmem:[#allocation8 + $0x10] sm:$0xff]
    %v222 = vld [vmem:[#allocation8 + $0x18] sm:$0xff]
    %v223 = vld [vmem:[#allocation10] sm:$0x1]
    %v225 = vperm.slane %v223, 0
    %v228 = vsel %vm112, %v218, 0
    %230 = vmatpush.msra.mxu0 0.0
    %231 = vmatpush.msra.mxu0 0.0
    %232 = vmatpush.msra.mxu0 0.0
    %233 = vmatpush.msra.mxu0 0.0
    %234 = vmatpush.msra.mxu0 0.0
    %235 = vmatpush.msra.mxu0 0.0
    %236 = vmatpush.msra.mxu0 0.0
    %237 = vmatpush.msra.mxu0 0.0
    %238 = vmatpush.msra.mxu0 0.0
    %239 = vmatpush.msra.mxu0 0.0
    %240 = vmatpush.msra.mxu0 0.0
    %241 = vmatpush.msra.mxu0 0.0
    %242 = vmatpush.msra.mxu0 %v222
    %243 = vmatpush.msra.mxu0 %v221
    %244 = vmatpush.msra.mxu0 %v220
    %245 = vmatpush.msra.mxu0 %v219
    %246 = vmatmul.f32.gmra.mxu0 %v228
    %v247 = vpop.f32.mrf.mxu0
    %v248 = vadd.f32 %v225, %v247
    %249 = vdwg.mxu0
    %v250 = vtanh.pop %v248
    %v251 = vld [vmem:[%s9] sm:$0x1]
    %v252 = vld [vmem:[%s10] sm:$0x1]
    %v253 = vsel %vm112, %v250, 0.0
    %254 = vadd.xlane.f32.xlu0 %v253
    %v255 = vpop.xlane.xlu0 %254
    %v256 = vmul.f32 %v255, 0.03125
    %v257 = vmul.f32 %v250, %v250
    %v258 = vsel %vm112, %v257, 0.0
    %259 = vadd.xlane.f32.xlu0 %v258
    %v260 = vpop.xlane.xlu0 %259
    %v261 = vmul.f32 %v260, 0.03125
    %v262 = vmul.f32 %v256, %v256
    %v263 = vsub.f32 %v261, %v262
    %v264 = vmax.f32 %v263, 0.0
    %v265 = vsub.f32 %v250, %v256
    %v266 = vadd.f32 %v264, 1e-05
    %v267 = vrsqrt.pop %v266
    %v268 = vmul.f32 %v267, %v266
    %v269 = vmul.f32 %v268, %v267
    %v270 = vmul.f32 0.5, %v269
    %v271 = vsub.f32 1.5, %v270
    %v272 = vmul.f32 %v267, %v271
    %vm273 = vweird.f32 %v266
    %vm274 = vweird.f32 %v267
    %vm275 = vmor %vm273, %vm274
    %v276 = vsel %vm275, %v267, %v272
    %v277 = vmul.f32 %v265, %v276
    %v279 = vperm.slane %v251, 0
    %v281 = vmul.f32 %v277, %v279
    %v283 = vperm.slane %v252, 0
    %v285 = vadd.f32 %v281, %v283
    %286 = vst.msk [vmem:[#allocation11] sm:$0xff] %vm112, %v285
    // Predicated region
    $region66: #{mlp_base_forward.1} parent=1 // pred_check
      _
    $region67: #{mlp_base_forward.1} parent=1 // pred_check_branch
      %288 = sbr.rel (0) target = $region69
    $region68: #{mlp_base_forward.1} parent=1 // pred_region
      %290 = vsyncadd [#allocation4], 0
      %s292 = sshll.u32 [#allocation11], 4
      %s293 = int_to_ptr.vmem [resolvable:$true] %s292
      %s294 = sshll.u32 %s11, 4
      %s295 = int_to_ptr.hbm [resolvable:$true] %s294
      %297 = dma.vmem_to_hbm [thread:$0]  %s293, 128, %s295, [#allocation4]
    $region69: #{mlp_base_forward.1} parent=1 // pred_fallthru
      _
    // Predicated region
    $region70: #{mlp_base_forward.1} parent=1 // pred_check
      _
    $region71: #{mlp_base_forward.1} parent=1 // pred_check_branch
      %299 = sbr.rel (0) target = $region73
    $region72: #{mlp_base_forward.1} parent=1 // pred_region
      %301 = dma.done [#allocation4], 128
    $region73: #{mlp_base_forward.1} parent=1 // pred_fallthru
      _
    %302 = vsyncpa [#allocation3], 1
    %303 = vsyncpa [#allocation6], 1
    %304 = vsyncpa [#allocation9], 1
    %305 = vsyncpa [#allocation4], 1

</llo_original>
